<compile_context>
chip_gen: v7x
topology: tpu7x:2x2x1
jax: 0.10.0
libtpu: 0.0.40
codegen_flags: <defaults>
</compile_context>

<pallas_src>
import jax
import jax.numpy as jnp
from jax.experimental import pallas as pl
from jax.experimental.pallas import tpu as pltpu


def _round_up(x, m):
    return (x + m - 1) // m * m


def _vmem_limit_bytes():
    """Derive a safe scoped-VMEM limit from the hardware (v7x: 64 MiB total)."""
    cap = 128 * 1024 * 1024
    try:
        info = pltpu.get_tpu_info()
        cap = int(getattr(info, "vmem_capacity_bytes", cap) or cap)
    except Exception:
        pass
    # Leave headroom: 3/4 of physical, capped at 96 MiB (=> 48 MiB on v7x).
    return int(min(cap * 3 // 4, 96 * 1024 * 1024))


def stnet_forward(x_nhwc, params, n_classes, *, tile_m=None, outer_split=1):
    """Fused conv-stem + global-avg-pool + Linear forward (NHWC input)."""
    B, H, W, Cin = x_nhwc.shape
    conv_w = params["conv_w"]            # (3, 3, Cin, Cf)  HWIO
    conv_b = params["conv_b"]            # (Cf,)
    fc_w = params["fc_w"]                # (Cf, n_classes)
    fc_b = params["fc_b"]                # (n_classes,)
    Cf = conv_w.shape[-1]

    M = H * W                             # conv output pixels per image
    K9 = 9 * Cin                          # merged contraction dim (all 9 taps)
    Kpad = _round_up(K9, 128) if K9 > 64 else _round_up(K9, 8)
    CFP = _round_up(Cf, 128)              # lane-dense feature channels
    NCP = _round_up(n_classes, 128)       # lane-dense logits

    vmem_limit = _vmem_limit_bytes()

    # ---- tile-size derivation (rows per grid step) --------------------------
    g = 16 if M % 16 == 0 else 8          # bf16 sublane-pack friendly granularity
    assert M % g == 0, "H*W must be a multiple of 8"
    if tile_m is None:
        # Per-row working set: f32 feats row (CFP*4 B) + double-buffered bf16
        # im2col row (2*Kpad*2 B). Target 1K-4K rows, fit in ~half the limit.
        per_row = CFP * 4 + 4 * Kpad
        target = max(g, min(4096, (vmem_limit // 2) // per_row))
        tile_m = min(M, (target // g) * g)
        while M % tile_m:
            tile_m -= g
    assert tile_m % g == 0 and M % tile_m == 0, "tile_m must divide H*W"
    T = M // tile_m
    assert T % outer_split == 0, "outer_split must divide the number of tiles"
    T_out = outer_split                    # "parallel" spatial chunks (v7x megacore)
    T_in = T // outer_split                # "arbitrary" reduction steps per chunk

    # ---- host-side (traced) prep: im2col LHS + padded weights ---------------
    # im2col read amplification (9x of a tiny 3-channel input) is negligible vs
    # the conv FLOPs and buys a single lane-dense K=9*Cin matmul in the kernel.
    xp = jnp.pad(x_nhwc, ((0, 0), (1, 1), (1, 1), (0, 0)))
    cols = [xp[:, kh:kh + H, kw:kw + W, :] for kh in range(3) for kw in range(3)]
    patches = jnp.concatenate(cols, axis=-1).reshape(B, M, K9)
    patches = jnp.pad(patches, ((0, 0), (0, 0), (0, Kpad - K9))).astype(jnp.bfloat16)

    w9 = jnp.pad(conv_w.reshape(K9, Cf),
                 ((0, Kpad - K9), (0, CFP - Cf))).astype(jnp.bfloat16)
    cb = jnp.pad(conv_b.reshape(1, Cf), ((0, 0), (0, CFP - Cf))).astype(jnp.float32)

    # Fold AdaptiveAvgPool2d's 1/(H*W) into the classifier weights (kernel does
    # a sum pool); split the bias across the T_out partial-logit chunks.
    fcw = jnp.pad(fc_w * (1.0 / (H * W)),
                  ((0, CFP - Cf), (0, NCP - n_classes))).astype(jnp.float32)
    fcb = jnp.pad(fc_b.reshape(1, n_classes) / float(T_out),
                  ((0, 0), (0, NCP - n_classes))).astype(jnp.float32)

    def kernel(p_ref, w_ref, cb_ref, fcw_ref, fcb_ref, o_ref, acc_ref):
        ti = pl.program_id(2)

        @pl.when(ti == 0)
        def _init():
            acc_ref[...] = jnp.zeros_like(acc_ref)

        # Single merged K=9*Cin bf16 MXU matmul (all taps), f32 accumulation.
        feats = jnp.dot(p_ref[0], w_ref[...],
                        preferred_element_type=jnp.float32)   # (tile_m, CFP)
        feats = jnp.maximum(feats + cb_ref[...], 0.0)          # bias + ReLU

        # Global-sum pool as a sublane reduction (VPU/XLU, f32) — no MXU pass,
        # no halo mask needed with im2col rows.
        acc_ref[...] += jnp.sum(feats, axis=0, keepdims=True)

        # Linear classifier on the pooled features, last reduction step only.
        @pl.when(ti == pl.num_programs(2) - 1)
        def _finalize():
            logits = jnp.dot(acc_ref[...], fcw_ref[...],
                             preferred_element_type=jnp.float32) + fcb_ref[...]
            o_ref[...] = jnp.broadcast_to(logits.reshape(1, 1, 1, NCP),
                                          o_ref.shape)

    flops = (2 * B * M * Kpad * CFP          # merged conv matmul
             + B * M * CFP                   # pooling adds
             + 2 * B * T_out * CFP * NCP)    # classifier
    bytes_accessed = (patches.size * 2 + w9.size * 2
                      + (cb.size + fcw.size + fcb.size) * 4
                      + B * T_out * 8 * NCP * 4)

    out = pl.pallas_call(
        kernel,
        out_shape=jax.ShapeDtypeStruct((B, T_out, 8, NCP), jnp.float32),
        grid=(B, T_out, T_in),
        in_specs=[
            pl.BlockSpec((1, tile_m, Kpad),
                         lambda b, to, ti: (b, to * T_in + ti, 0)),
            pl.BlockSpec((Kpad, CFP), lambda b, to, ti: (0, 0)),
            pl.BlockSpec((1, CFP), lambda b, to, ti: (0, 0)),
            pl.BlockSpec((CFP, NCP), lambda b, to, ti: (0, 0)),
            pl.BlockSpec((1, NCP), lambda b, to, ti: (0, 0)),
        ],
        out_specs=pl.BlockSpec((1, 1, 8, NCP), lambda b, to, ti: (b, to, 0, 0)),
        scratch_shapes=[pltpu.VMEM((1, CFP), jnp.float32)],
        compiler_params=pltpu.CompilerParams(
            dimension_semantics=("parallel", "parallel", "arbitrary"),
            vmem_limit_bytes=vmem_limit),
        cost_estimate=pl.CostEstimate(flops=flops, transcendentals=0,
                                      bytes_accessed=bytes_accessed),
    )(patches, w9, cb, fcw, fcb)

    # Combine per-T_outer partial logits (bias already split), drop padding.
    return out[:, :, 0, :n_classes].sum(axis=1)


def stnet_reference(x_nhwc, conv_w, conv_b, fc_w, fc_b):
    """Pure-JAX reference (same bf16-cast operands as the kernel's MXU path)."""
    xb = x_nhwc.astype(jnp.bfloat16).astype(jnp.float32)
    wb = conv_w.astype(jnp.bfloat16).astype(jnp.float32)
    y = jax.lax.conv_general_dilated(
        xb, wb, window_strides=(1, 1), padding=((1, 1), (1, 1)),
        dimension_numbers=("NHWC", "HWIO", "NHWC"))
    y = jnp.maximum(y + conv_b.reshape(1, 1, 1, -1), 0.0)
    pooled = jnp.mean(y, axis=(1, 2))       # AdaptiveAvgPool2d((1,1)) + squeeze
    return pooled @ fc_w + fc_b.reshape(1, -1)


if __name__ == "__main__":
    # Small synthetic shapes consistent with the module's forward pass.
    B, Cin, H, W = 2, 3, 16, 16
    Cf = 32             # stand-in for densenet121's 1024 feature channels
    n_classes = 10

    key = jax.random.PRNGKey(0)
    kx, kcw, kcb, kfw, kfb = jax.random.split(key, 5)

    x_nchw = jax.random.normal(kx, (B, Cin, H, W), dtype=jnp.float32)
    x_nhwc = jnp.transpose(x_nchw, (0, 2, 3, 1))        # PyTorch NCHW -> NHWC

    conv_w = jax.random.normal(kcw, (3, 3, Cin, Cf), dtype=jnp.float32) * 0.1
    conv_b = jax.random.normal(kcb, (Cf,), dtype=jnp.float32) * 0.1
    fc_w = jax.random.normal(kfw, (Cf, n_classes), dtype=jnp.float32) * 0.1
    fc_b = jax.random.normal(kfb, (n_classes,), dtype=jnp.float32) * 0.1

    params = {"conv_w": conv_w, "conv_b": conv_b, "fc_w": fc_w, "fc_b": fc_b}
    ref = stnet_reference(x_nhwc, conv_w, conv_b, fc_w, fc_b)

    # tile_m=64 -> 4 reduction steps per image, exercising the accumulator path.
    logits = stnet_forward(x_nhwc, params, n_classes, tile_m=64)
    jax.block_until_ready(logits)
    assert logits.shape == (B, n_classes)
    err = float(jnp.max(jnp.abs(logits - ref)))
    assert err < 2e-2, f"max abs error vs reference: {err}"

    # outer_split=2 exercises the megacore (v7x) partial-logit path.
    logits2 = stnet_forward(x_nhwc, params, n_classes, tile_m=64, outer_split=2)
    jax.block_until_ready(logits2)
    err2 = float(jnp.max(jnp.abs(logits2 - ref)))
    assert err2 < 2e-2, f"max abs error vs reference (outer_split=2): {err2}"

    # Note: PyTorch's .squeeze() B==1 edge case is not handled (B > 1 here).
    print("KERNEL_OK")
</pallas_src>

<mosaic_0001>
module attributes {stable_mosaic.version = 11 : i64} {
  func.func @kernel(%arg0: i32, %arg1: i32, %arg2: i32, %arg3: memref<1x64x32xbf16, #tpu.memory_space<vmem>>, %arg4: memref<32x128xbf16, #tpu.memory_space<vmem>>, %arg5: memref<1x128xf32, #tpu.memory_space<vmem>>, %arg6: memref<128x128xf32, #tpu.memory_space<vmem>>, %arg7: memref<1x128xf32, #tpu.memory_space<vmem>>, %arg8: memref<1x1x8x128xf32, #tpu.memory_space<vmem>>, %arg9: memref<1x128xf32, #tpu.memory_space<vmem>>) attributes {dimension_semantics = [#tpu.dimension_semantics<parallel>, #tpu.dimension_semantics<parallel>, #tpu.dimension_semantics<arbitrary>], iteration_bounds = array<i64: 2, 1, 4>, scalar_prefetch = 0 : i64, scratch_operands = 1 : i64, tpu.core_type = #tpu.core_type<tc>, window_params = [{transform_indices = @transform_0, window_bounds = array<i64: 1, 64, 32>}, {pipeline_mode = #tpu.pipeline_mode<synchronous>, transform_indices = @transform_1, window_bounds = array<i64: 32, 128>}, {pipeline_mode = #tpu.pipeline_mode<synchronous>, transform_indices = @transform_2, window_bounds = array<i64: 1, 128>}, {pipeline_mode = #tpu.pipeline_mode<synchronous>, transform_indices = @transform_3, window_bounds = array<i64: 128, 128>}, {pipeline_mode = #tpu.pipeline_mode<synchronous>, transform_indices = @transform_4, window_bounds = array<i64: 1, 128>}, {transform_indices = @transform_5, window_bounds = array<i64: 1, 1, 8, 128>}]} {
    %c0_i32 = arith.constant 0 : i32
    %0 = arith.cmpi eq, %arg2, %c0_i32 : i32
    %1 = arith.extui %0 : i1 to i32
    %c0_i32_0 = arith.constant 0 : i32
    %2 = arith.cmpi ne, %1, %c0_i32_0 : i32
    scf.if %2 {
      %cst_14 = arith.constant 0.000000e+00 : f32
      %20 = vector.broadcast %cst_14 : f32 to vector<1x128xf32>
      %c0_15 = arith.constant 0 : index
      %c0_16 = arith.constant 0 : index
      %21 = vector.load %arg9[%c0_15, %c0_16] : memref<1x128xf32, #tpu.memory_space<vmem>>, vector<1x128xf32>
      tpu.vector_store %arg9[%c0_15, %c0_16], %20 {strides = array<i32>} : memref<1x128xf32, #tpu.memory_space<vmem>>, vector<1x128xf32>,
    } else {
    }
    %c0 = arith.constant 0 : index
    %c0_1 = arith.constant 0 : index
    %c0_2 = arith.constant 0 : index
    %3 = vector.load %arg3[%c0, %c0_1, %c0_2] : memref<1x64x32xbf16, #tpu.memory_space<vmem>>, vector<1x64x32xbf16>
    %4 = vector.shape_cast %3 : vector<1x64x32xbf16> to vector<64x32xbf16>
    %c0_3 = arith.constant 0 : index
    %c0_4 = arith.constant 0 : index
    %5 = vector.load %arg4[%c0_3, %c0_4] : memref<32x128xbf16, #tpu.memory_space<vmem>>, vector<32x128xbf16>
    %cst = arith.constant dense<0.000000e+00> : vector<64x128xf32>
    %6 = tpu.matmul %4, %5, %cst {dimension_numbers = #tpu.dot_dimension_numbers<[1], [0], [0], [1], [0, 0, 1, 1], [], []>} : vector<64x32xbf16>, vector<32x128xbf16>, vector<64x128xf32> -> vector<64x128xf32>
    %c0_5 = arith.constant 0 : index
    %c0_6 = arith.constant 0 : index
    %7 = vector.load %arg5[%c0_5, %c0_6] : memref<1x128xf32, #tpu.memory_space<vmem>>, vector<1x128xf32>
    %8 = vector.broadcast %7 : vector<1x128xf32> to vector<64x128xf32>
    %9 = arith.addf %6, %8 : vector<64x128xf32>
    %cst_7 = arith.constant 0.000000e+00 : f32
    %10 = vector.broadcast %cst_7 : f32 to vector<64x128xf32>
    %11 = arith.maximumf %9, %10 : vector<64x128xf32>
    %c0_8 = arith.constant 0 : index
    %c0_9 = arith.constant 0 : index
    %12 = vector.load %arg9[%c0_8, %c0_9] : memref<1x128xf32, #tpu.memory_space<vmem>>, vector<1x128xf32>
    %cst_10 = arith.constant dense<0.000000e+00> : vector<128xf32>
    %13 = vector.multi_reduction <add>, %11, %cst_10 [0] : vector<64x128xf32> to vector<128xf32>
    %14 = vector.shape_cast %13 : vector<128xf32> to vector<1x128xf32>
    %15 = arith.addf %12, %14 : vector<1x128xf32>
    %c0_11 = arith.constant 0 : index
    %c0_12 = arith.constant 0 : index
    %16 = vector.load %arg9[%c0_11, %c0_12] : memref<1x128xf32, #tpu.memory_space<vmem>>, vector<1x128xf32>
    tpu.vector_store %arg9[%c0_11, %c0_12], %15 {strides = array<i32>} : memref<1x128xf32, #tpu.memory_space<vmem>>, vector<1x128xf32>,
    %c3_i32 = arith.constant 3 : i32
    %17 = arith.cmpi eq, %arg2, %c3_i32 : i32
    %18 = arith.extui %17 : i1 to i32
    %c0_i32_13 = arith.constant 0 : i32
    %19 = arith.cmpi ne, %18, %c0_i32_13 : i32
    scf.if %19 {
      %c0_14 = arith.constant 0 : index
      %c0_15 = arith.constant 0 : index
      %20 = vector.load %arg9[%c0_14, %c0_15] : memref<1x128xf32, #tpu.memory_space<vmem>>, vector<1x128xf32>
      %c0_16 = arith.constant 0 : index
      %c0_17 = arith.constant 0 : index
      %21 = vector.load %arg6[%c0_16, %c0_17] : memref<128x128xf32, #tpu.memory_space<vmem>>, vector<128x128xf32>
      %cst_18 = arith.constant dense<0.000000e+00> : vector<1x128xf32>
      %22 = tpu.matmul %20, %21, %cst_18 {dimension_numbers = #tpu.dot_dimension_numbers<[1], [0], [0], [1], [0, 0, 1, 1], [], []>} : vector<1x128xf32>, vector<128x128xf32>, vector<1x128xf32> -> vector<1x128xf32>
      %c0_19 = arith.constant 0 : index
      %c0_20 = arith.constant 0 : index
      %23 = vector.load %arg7[%c0_19, %c0_20] : memref<1x128xf32, #tpu.memory_space<vmem>>, vector<1x128xf32>
      %24 = arith.addf %22, %23 : vector<1x128xf32>
      %25 = vector.shape_cast %24 : vector<1x128xf32> to vector<1x1x1x128xf32>
      %26 = vector.shape_cast %25 : vector<1x1x1x128xf32> to vector<1x1x1x128xf32>
      %27 = vector.broadcast %26 : vector<1x1x1x128xf32> to vector<1x1x8x128xf32>
      %c0_21 = arith.constant 0 : index
      %c0_22 = arith.constant 0 : index
      %c0_23 = arith.constant 0 : index
      %c0_24 = arith.constant 0 : index
      %28 = vector.load %arg8[%c0_21, %c0_22, %c0_23, %c0_24] : memref<1x1x8x128xf32, #tpu.memory_space<vmem>>, vector<1x1x8x128xf32>
      tpu.vector_store %arg8[%c0_21, %c0_22, %c0_23, %c0_24], %27 {strides = array<i32>} : memref<1x1x8x128xf32, #tpu.memory_space<vmem>>, vector<1x1x8x128xf32>,
    } else {
    }
    return
  }
  func.func @transform_0(%arg0: i32, %arg1: i32, %arg2: i32) -> (i32, i32, i32) {
    %c4_i32 = arith.constant 4 : i32
    %0 = arith.muli %arg1, %c4_i32 : i32
    %1 = arith.addi %0, %arg2 : i32
    %c0_i32 = arith.constant 0 : i32
    %c0_i32_0 = arith.constant 0 : i32
    return %arg0, %1, %c0_i32 : i32, i32, i32
  }
  func.func @transform_1(%arg0: i32, %arg1: i32, %arg2: i32) -> (i32, i32) {
    %c0_i32 = arith.constant 0 : i32
    %c0_i32_0 = arith.constant 0 : i32
    %c0_i32_1 = arith.constant 0 : i32
    return %c0_i32, %c0_i32_0 : i32, i32
  }
  func.func @transform_2(%arg0: i32, %arg1: i32, %arg2: i32) -> (i32, i32) {
    %c0_i32 = arith.constant 0 : i32
    %c0_i32_0 = arith.constant 0 : i32
    %c0_i32_1 = arith.constant 0 : i32
    return %c0_i32, %c0_i32_0 : i32, i32
  }
  func.func @transform_3(%arg0: i32, %arg1: i32, %arg2: i32) -> (i32, i32) {
    %c0_i32 = arith.constant 0 : i32
    %c0_i32_0 = arith.constant 0 : i32
    %c0_i32_1 = arith.constant 0 : i32
    return %c0_i32, %c0_i32_0 : i32, i32
  }
  func.func @transform_4(%arg0: i32, %arg1: i32, %arg2: i32) -> (i32, i32) {
    %c0_i32 = arith.constant 0 : i32
    %c0_i32_0 = arith.constant 0 : i32
    %c0_i32_1 = arith.constant 0 : i32
    return %c0_i32, %c0_i32_0 : i32, i32
  }
  func.func @transform_5(%arg0: i32, %arg1: i32, %arg2: i32) -> (i32, i32, i32, i32) {
    %c0_i32 = arith.constant 0 : i32
    %c0_i32_0 = arith.constant 0 : i32
    %c0_i32_1 = arith.constant 0 : i32
    return %arg0, %arg1, %c0_i32, %c0_i32_0 : i32, i32, i32, i32
  }
}

</mosaic_0001>

<llo_original>
// kernel: tpu_custom_call.1
$region0: #{tpu_custom_call.1}
  #allocation0 [shape = 'u32[]', space=smem, size = 0x4, offset = 0x4, fixed_abs, tag = 'smem constant byte address 0x4 - core index']
  #allocation1 [shape = 'u32[144,128]{1,0:T(1,128)}', space=vmem, size = 0x12000, scoped, tag = 'internal scratch']
  #allocation2 [shape = 'f32[1,128]{1,0:T(1,128)}', space=vmem, size = 0x200, scoped, tag = 'scratch operand']
  %s0 = inlined_call_operand.hbm [shape: bf16[2,256,32], index: 0, kind: input, shape index: {}]
  %s1 = inlined_call_operand.hbm [shape: bf16[32,128], index: 1, kind: input, shape index: {}]
  %s2 = inlined_call_operand.hbm [shape: f32[1,128], index: 2, kind: input, shape index: {}]
  %s3 = inlined_call_operand.hbm [shape: f32[128,128], index: 3, kind: input, shape index: {}]
  %s4 = inlined_call_operand.hbm [shape: f32[1,128], index: 4, kind: input, shape index: {}]
  %s5 = inlined_call_operand.hbm [shape: f32[2,1,8,128], index: 5, kind: output, shape index: {}]
  %s6 = sld [smem:[#allocation0]]
  $region81: #{tpu_custom_call.1} parent=0
    _
  %s8 = ssub.s32 1, %s6
  %s9 = scalar_select 0, %s8, %s6
  $region1: #{tpu_custom_call.1} parent=0
    #allocation3 [shape = 'u8[32768]{0}', space=vmem, size = 0x8000, scoped, tag = 'input window, operand 0']
    #allocation4 [shape = 's32[2]{0}', space=sflag, size = 0x8, scoped, tag = 'scoped memory for tpu_custom_call.1']
    #allocation5 [shape = 's32[2]{0}', space=sflag, size = 0x8, scoped, tag = 'scoped memory for tpu_custom_call.1']
    #allocation6 [shape = 'u8[8192]{0}', space=vmem, size = 0x2000, scoped, tag = 'input window, operand 1, single buffered']
    #allocation7 [shape = 's32[1]{0}', space=sflag, size = 0x4, scoped, tag = 'scoped memory for tpu_custom_call.1']
    #allocation8 [shape = 'u8[512]{0}', space=vmem, size = 0x400, scoped, tag = 'input window, operand 2, single buffered']
    #allocation9 [shape = 'u8[65536]{0}', space=vmem, size = 0x10000, scoped, tag = 'input window, operand 3, single buffered']
    #allocation10 [shape = 's32[1]{0}', space=sflag, size = 0x4, scoped, tag = 'scoped memory for tpu_custom_call.1']
    #allocation11 [shape = 'u8[512]{0}', space=vmem, size = 0x400, scoped, tag = 'input window, operand 4, single buffered']
    #allocation12 [shape = 'u8[8192]{0}', space=vmem, size = 0x2000, scoped, tag = 'output window, operand 0']
    %10 = vsyncpa [#allocation4], 0
    %s11 = scalar_lea.sflag [#allocation4], 1
    %12 = vsyncpa %s11, 0
    %13 = vsyncpa [#allocation7], 0
    %14 = vsyncpa [#allocation10], 0
    %15 = vsyncpa [#allocation5], 0
    %s16 = scalar_lea.sflag [#allocation5], 1
    %17 = vsyncpa %s16, 0
    loop: start=0, step=1, limit=10
    $region2: #{tpu_custom_call.1} parent=1 // loop_pre_header
      _
    $region3: #{tpu_custom_call.1} parent=1 // loop_header
      %s19 = sphi 0, %s23
      %p20 = scmp.ge.s32.totalorder %s19, 10
      %s26 = sphi 0, %s45
      %s27 = sphi 0, %s41
      %s28 = sphi 0, %s37
      %s29 = sphi 0, %s26
      %s30 = sphi 0, %s27
      %s31 = sphi 0, %s28
      %s32 = sphi 0, %s29
      %s33 = sphi 0, %s30
      %s34 = sphi 0, %s31
      %s54 = sphi 0, %s56
      %s57 = sphi 0, %s54
      %s58 = sphi 0, %s57
      %s74 = sphi 0, %s58
      %s78 = sphi 0, %s78
      %s80 = sphi 0, %s78
      %s81 = sphi 0, %s80
      %s95 = sphi 0, %s81
      %s99 = sphi 0, %s99
      %s101 = sphi 0, %s99
      %s102 = sphi 0, %s101
      %s116 = sphi 0, %s102
      %s120 = sphi 0, %s120
      %s122 = sphi 0, %s120
      %s123 = sphi 0, %s122
      %s137 = sphi 0, %s123
      %s141 = sphi 0, %s141
      %s143 = sphi 0, %s141
      %s144 = sphi 0, %s143
      %s158 = sphi 0, %s144
      %s166 = sphi 0, %s168
      %s169 = sphi 0, %s166
      %s170 = sphi 0, %s169
      %s186 = sphi 0, %s170
    $region4: #{tpu_custom_call.1} parent=1 // loop_header_branch
      %22 = sbr.rel (%p20) target = $region8
    $region5: #{tpu_custom_call.1} parent=1 // loop_body
      %s24 = ssub.s32 %s19, 1
      %s25 = ssub.s32 %s19, 2
      %s35 = sadd.s32 1, %s28
      %p36 = scmp.ge.s32.totalorder %s35, 4
      %s37 = scalar_select %p36, 0, %s35
      %s38 = sadd.s32 1, %s27
      %s39 = scalar_select %p36, %s38, %s27
      %p40 = scmp.ge.s32.totalorder %s39, 1
      %s41 = scalar_select %p40, 0, %s39
      %s42 = sadd.s32 1, %s26
      %s43 = scalar_select %p40, %s42, %s26
      %p44 = scmp.ge.s32.totalorder %s43, 2
      %s45 = scalar_select %p44, 0, %s43
      %s46 = smul.u32 %s27, 4
      %s47 = sadd.s32 %s46, %s28
      %s48 = smul.u32 %s41, 4
      %s49 = sadd.s32 %s48, %s37
      %s50 = ssub.s32 %s26, %s45
      %s51 = ssub.s32 %s47, %s49
      %s52 = sor.u32 %s50, %s51
      %p53 = scmp.eq.s32.totalorder %s52, 0
      %s55 = sadd.s32 %s54, 1
      %s56 = scalar_select %p53, %s54, %s55
      %p59 = pneg %p53
      %p60 = scmp.eq.s32.totalorder %s19, 7
      %p61 = por %p59, %p60
      %p62 = scmp.ne.s32.totalorder %s54, %s57
      %p63 = scmp.eq.s32.totalorder %s19, 0
      %p64 = por %p62, %p63
      %p65 = scmp.ne.s32.totalorder %s54, %s57
      %p66 = scmp.eq.s32.totalorder %s24, 7
      %p67 = por %p65, %p66
      %p68 = scmp.ne.s32.totalorder %s57, %s58
      %p69 = scmp.eq.s32.totalorder %s24, 0
      %p70 = por %p68, %p69
      %p71 = scmp.ne.s32.totalorder %s57, %s58
      %p72 = scmp.eq.s32.totalorder %s25, 7
      %p73 = por %p71, %p72
      %p75 = scmp.ne.s32.totalorder %s58, %s74
      %p76 = scmp.eq.s32.totalorder %s25, 0
      %p77 = por %p75, %p76
      %s79 = sadd.s32 %s78, 1
      %p82 = scmp.eq.s32.totalorder %s19, 7
      %p83 = scmp.ne.s32.totalorder %s78, %s80
      %p84 = scmp.eq.s32.totalorder %s19, 0
      %p85 = por %p83, %p84
      %p86 = scmp.ne.s32.totalorder %s78, %s80
      %p87 = scmp.eq.s32.totalorder %s24, 7
      %p88 = por %p86, %p87
      %p89 = scmp.ne.s32.totalorder %s80, %s81
      %p90 = scmp.eq.s32.totalorder %s24, 0
      %p91 = por %p89, %p90
      %p92 = scmp.ne.s32.totalorder %s80, %s81
      %p93 = scmp.eq.s32.totalorder %s25, 7
      %p94 = por %p92, %p93
      %p96 = scmp.ne.s32.totalorder %s81, %s95
      %p97 = scmp.eq.s32.totalorder %s25, 0
      %p98 = por %p96, %p97
      %s100 = sadd.s32 %s99, 1
      %p103 = scmp.eq.s32.totalorder %s19, 7
      %p104 = scmp.ne.s32.totalorder %s99, %s101
      %p105 = scmp.eq.s32.totalorder %s19, 0
      %p106 = por %p104, %p105
      %p107 = scmp.ne.s32.totalorder %s99, %s101
      %p108 = scmp.eq.s32.totalorder %s24, 7
      %p109 = por %p107, %p108
      %p110 = scmp.ne.s32.totalorder %s101, %s102
      %p111 = scmp.eq.s32.totalorder %s24, 0
      %p112 = por %p110, %p111
      %p113 = scmp.ne.s32.totalorder %s101, %s102
      %p114 = scmp.eq.s32.totalorder %s25, 7
      %p115 = por %p113, %p114
      %p117 = scmp.ne.s32.totalorder %s102, %s116
      %p118 = scmp.eq.s32.totalorder %s25, 0
      %p119 = por %p117, %p118
      %s121 = sadd.s32 %s120, 1
      %p124 = scmp.eq.s32.totalorder %s19, 7
      %p125 = scmp.ne.s32.totalorder %s120, %s122
      %p126 = scmp.eq.s32.totalorder %s19, 0
      %p127 = por %p125, %p126
      %p128 = scmp.ne.s32.totalorder %s120, %s122
      %p129 = scmp.eq.s32.totalorder %s24, 7
      %p130 = por %p128, %p129
      %p131 = scmp.ne.s32.totalorder %s122, %s123
      %p132 = scmp.eq.s32.totalorder %s24, 0
      %p133 = por %p131, %p132
      %p134 = scmp.ne.s32.totalorder %s122, %s123
      %p135 = scmp.eq.s32.totalorder %s25, 7
      %p136 = por %p134, %p135
      %p138 = scmp.ne.s32.totalorder %s123, %s137
      %p139 = scmp.eq.s32.totalorder %s25, 0
      %p140 = por %p138, %p139
      %s142 = sadd.s32 %s141, 1
      %p145 = scmp.eq.s32.totalorder %s19, 7
      %p146 = scmp.ne.s32.totalorder %s141, %s143
      %p147 = scmp.eq.s32.totalorder %s19, 0
      %p148 = por %p146, %p147
      %p149 = scmp.ne.s32.totalorder %s141, %s143
      %p150 = scmp.eq.s32.totalorder %s24, 7
      %p151 = por %p149, %p150
      %p152 = scmp.ne.s32.totalorder %s143, %s144
      %p153 = scmp.eq.s32.totalorder %s24, 0
      %p154 = por %p152, %p153
      %p155 = scmp.ne.s32.totalorder %s143, %s144
      %p156 = scmp.eq.s32.totalorder %s25, 7
      %p157 = por %p155, %p156
      %p159 = scmp.ne.s32.totalorder %s144, %s158
      %p160 = scmp.eq.s32.totalorder %s25, 0
      %p161 = por %p159, %p160
      %s162 = ssub.s32 %s26, %s45
      %s163 = ssub.s32 %s27, %s41
      %s164 = sor.u32 %s162, %s163
      %p165 = scmp.eq.s32.totalorder %s164, 0
      %s167 = sadd.s32 %s166, 1
      %s168 = scalar_select %p165, %s166, %s167
      %p171 = pneg %p165
      %p172 = scmp.eq.s32.totalorder %s19, 7
      %p173 = por %p171, %p172
      %p174 = scmp.ne.s32.totalorder %s166, %s169
      %p175 = scmp.eq.s32.totalorder %s19, 0
      %p176 = por %p174, %p175
      %p177 = scmp.ne.s32.totalorder %s166, %s169
      %p178 = scmp.eq.s32.totalorder %s24, 7
      %p179 = por %p177, %p178
      %p180 = scmp.ne.s32.totalorder %s169, %s170
      %p181 = scmp.eq.s32.totalorder %s24, 0
      %p182 = por %p180, %p181
      %p183 = scmp.ne.s32.totalorder %s169, %s170
      %p184 = scmp.eq.s32.totalorder %s25, 7
      %p185 = por %p183, %p184
      %p187 = scmp.ne.s32.totalorder %s170, %s186
      %p188 = scmp.eq.s32.totalorder %s25, 0
      %p189 = por %p187, %p188
      %p190 = scmp.le.s32.totalorder 1, %s19
      %p191 = scmp.lt.s32.totalorder %s19, 9
      %p192 = pnand %p190, %p191
      %p193 = pneg %p192
      // Predicated region
      $region9: #{tpu_custom_call.1} parent=5 // pred_check
        _
      $region10: #{tpu_custom_call.1} parent=5 // pred_check_branch
        %195 = sbr.rel (%p192) target = $region12
      $region11: #{tpu_custom_call.1} parent=5 // pred_region
        %s196 = ssub.s32 %s19, 1
        // Predicated region
        $region13: #{tpu_custom_call.1} parent=11 // pred_check
          %p197 = pneg %p91
        $region14: #{tpu_custom_call.1} parent=11 // pred_check_branch
          %199 = sbr.rel (%p197) target = $region16
        $region15: #{tpu_custom_call.1} parent=11 // pred_region
          %s201 = ssub.s32 256, 256
          %202 = vsyncadd [#allocation7], %s201
          %s203 = sshll.u32 [#allocation6], 4
          %s204 = int_to_ptr.vmem [resolvable:$true] %s203
          %209 = dma.hbm_to_vmem [thread:$0]  %s1, 256, %s204, [#allocation7], 64, 64, 4
        $region16: #{tpu_custom_call.1} parent=11 // pred_fallthru
          _
        // Predicated region
        $region17: #{tpu_custom_call.1} parent=11 // pred_check
          %p210 = pneg %p112
        $region18: #{tpu_custom_call.1} parent=11 // pred_check_branch
          %212 = sbr.rel (%p210) target = $region20
        $region19: #{tpu_custom_call.1} parent=11 // pred_region
          %s214 = ssub.s32 16, 16
          %215 = vsyncadd [#allocation7], %s214
          %s217 = sshll.u32 [#allocation8], 4
          %s218 = int_to_ptr.vmem [resolvable:$true] %s217
          %220 = dma.hbm_to_vmem [thread:$0]  %s2, 16, %s218, [#allocation7]
        $region20: #{tpu_custom_call.1} parent=11 // pred_fallthru
          _
        // Predicated region
        $region21: #{tpu_custom_call.1} parent=11 // pred_check
          %p221 = pneg %p133
        $region22: #{tpu_custom_call.1} parent=11 // pred_check_branch
          %223 = sbr.rel (%p221) target = $region24
        $region23: #{tpu_custom_call.1} parent=11 // pred_region
          %s225 = ssub.s32 2048, 2048
          %226 = vsyncadd [#allocation10], %s225
          %s227 = sshll.u32 [#allocation9], 4
          %s228 = int_to_ptr.vmem [resolvable:$true] %s227
          %233 = dma.hbm_to_vmem [thread:$0]  %s3, 2048, %s228, [#allocation10], 128, 128, 8
        $region24: #{tpu_custom_call.1} parent=11 // pred_fallthru
          _
        // Predicated region
        $region25: #{tpu_custom_call.1} parent=11 // pred_check
          %p234 = pneg %p154
        $region26: #{tpu_custom_call.1} parent=11 // pred_check_branch
          %236 = sbr.rel (%p234) target = $region28
        $region27: #{tpu_custom_call.1} parent=11 // pred_region
          %s238 = ssub.s32 16, 16
          %239 = vsyncadd [#allocation10], %s238
          %s241 = sshll.u32 [#allocation11], 4
          %s242 = int_to_ptr.vmem [resolvable:$true] %s241
          %244 = dma.hbm_to_vmem [thread:$0]  %s4, 16, %s242, [#allocation10]
        $region28: #{tpu_custom_call.1} parent=11 // pred_fallthru
          _
      $region12: #{tpu_custom_call.1} parent=5 // pred_fallthru
        _
      %p245 = scmp.lt.s32.totalorder %s19, 8
      // Predicated region
      $region29: #{tpu_custom_call.1} parent=5 // pred_check
        %p246 = pneg %p245
      $region30: #{tpu_custom_call.1} parent=5 // pred_check_branch
        %248 = sbr.rel (%p246) target = $region32
      $region31: #{tpu_custom_call.1} parent=5 // pred_region
        // Predicated region
        $region33: #{tpu_custom_call.1} parent=31 // pred_check
          %p249 = pneg %p64
        $region34: #{tpu_custom_call.1} parent=31 // pred_check_branch
          %251 = sbr.rel (%p249) target = $region36
        $region35: #{tpu_custom_call.1} parent=31 // pred_region
          %s252 = sand.u32 %s54, 1
          %s253 = scalar_lea.sflag [#allocation4], %s252
          %s254 = sand.u32 %s54, 1
          %s255 = smul.addr %s254, 32
          %s256 = scalar_lea.vmem [#allocation3], %s255
          %s257 = smul.u32 %s27, 4
          %s258 = sadd.s32 %s257, %s28
          %s259 = smul.u32 8, %s258
          %s261 = ssub.s32 512, 512
          %262 = vsyncadd %s253, %s261
          %s263 = smul.addr %s26, 32
          %s264 = sadd.s32 %s259, %s263
          %s265 = smul.addr %s264, 64
          %s266 = scalar_lea.hbm %s0, %s265
          %s267 = sshll.u32 %s256, 4
          %s268 = int_to_ptr.vmem [resolvable:$true] %s267
          %273 = dma.hbm_to_vmem [thread:$0]  %s266, 512, %s268, %s253, 64, 64, 4
        $region36: #{tpu_custom_call.1} parent=31 // pred_fallthru
          _
      $region32: #{tpu_custom_call.1} parent=5 // pred_fallthru
        _
      %p274 = scmp.le.s32.totalorder 1, %s19
      %p275 = scmp.lt.s32.totalorder %s19, 9
      %p276 = pnand %p274, %p275
      %p277 = pneg %p276
      // Predicated region
      $region37: #{tpu_custom_call.1} parent=5 // pred_check
        _
      $region38: #{tpu_custom_call.1} parent=5 // pred_check_branch
        %279 = sbr.rel (%p276) target = $region40
      $region39: #{tpu_custom_call.1} parent=5 // pred_region
        %s280 = ssub.s32 %s19, 1
        %s281 = sand.u32 %s57, 1
        %s282 = scalar_lea.sflag [#allocation4], %s281
        %s283 = sand.u32 %s57, 1
        %s284 = smul.addr %s283, 32
        %s285 = scalar_lea.vmem [#allocation3], %s284
        // Predicated region
        $region41: #{tpu_custom_call.1} parent=39 // pred_check
          %p286 = pneg %p70
        $region42: #{tpu_custom_call.1} parent=39 // pred_check_branch
          %288 = sbr.rel (%p286) target = $region44
        $region43: #{tpu_custom_call.1} parent=39 // pred_region
          %289 = dma.done %s282, 512
        $region44: #{tpu_custom_call.1} parent=39 // pred_fallthru
          _
        // Predicated region
        $region45: #{tpu_custom_call.1} parent=39 // pred_check
          %p290 = pneg %p91
        $region46: #{tpu_custom_call.1} parent=39 // pred_check_branch
          %292 = sbr.rel (%p290) target = $region48
        $region47: #{tpu_custom_call.1} parent=39 // pred_region
          %293 = dma.done [#allocation7], 256
        $region48: #{tpu_custom_call.1} parent=39 // pred_fallthru
          _
        // Predicated region
        $region49: #{tpu_custom_call.1} parent=39 // pred_check
          %p294 = pneg %p112
        $region50: #{tpu_custom_call.1} parent=39 // pred_check_branch
          %296 = sbr.rel (%p294) target = $region52
        $region51: #{tpu_custom_call.1} parent=39 // pred_region
          %297 = dma.done [#allocation7], 16
        $region52: #{tpu_custom_call.1} parent=39 // pred_fallthru
          _
        // Predicated region
        $region53: #{tpu_custom_call.1} parent=39 // pred_check
          %p298 = pneg %p133
        $region54: #{tpu_custom_call.1} parent=39 // pred_check_branch
          %300 = sbr.rel (%p298) target = $region56
        $region55: #{tpu_custom_call.1} parent=39 // pred_region
          %301 = dma.done [#allocation10], 2048
        $region56: #{tpu_custom_call.1} parent=39 // pred_fallthru
          _
        // Predicated region
        $region57: #{tpu_custom_call.1} parent=39 // pred_check
          %p302 = pneg %p154
        $region58: #{tpu_custom_call.1} parent=39 // pred_check_branch
          %304 = sbr.rel (%p302) target = $region60
        $region59: #{tpu_custom_call.1} parent=39 // pred_region
          %305 = dma.done [#allocation10], 16
        $region60: #{tpu_custom_call.1} parent=39 // pred_fallthru
          _
        %s306 = sand.u32 %s57, 1
        %s307 = scalar_lea.sflag [#allocation4], %s306
        %s308 = sand.u32 %s57, 1
        %s309 = smul.addr %s308, 32
        %s310 = scalar_lea.vmem [#allocation3], %s309
        %p311 = pneg %p70
        %p312 = pneg %p67
        %p313 = pneg %p91
        %p314 = pneg %p88
        %p315 = pneg %p112
        %p316 = pneg %p109
        %p317 = pneg %p133
        %p318 = pneg %p130
        %p319 = pneg %p154
        %p320 = pneg %p151
        %p321 = pneg %p182
        %p322 = pneg %p179
        %s323 = sand.u32 %s169, 1
        %s324 = scalar_lea.sflag [#allocation5], %s323
        %s325 = sand.u32 %s169, 1
        %s326 = smul.addr %s325, 8
        %s327 = scalar_lea.vmem [#allocation12], %s326
        %s328 = smul.u32 %s30, 4
        %s329 = sadd.s32 %s328, %s31
        %s330 = smul.u32 8, %s329
        %p332 = scmp.eq.s32.totalorder %s31, 0
        // Predicated region
        $region61: #{tpu_custom_call.1} parent=39 // pred_check
          %p333 = pneg %p332
        $region62: #{tpu_custom_call.1} parent=39 // pred_check_branch
          %335 = sbr.rel (%p333) target = $region64
        $region63: #{tpu_custom_call.1} parent=39 // pred_region
          %336 = vst [vmem:[#allocation2] sm:$0x1] 0.0
        $region64: #{tpu_custom_call.1} parent=39 // pred_fallthru
          _
        %v337 = vld [vmem:[%s285] sm:$0xf]
        %v338 = vld [vmem:[%s285 + $0x4] sm:$0xf]
        %v339 = vld [vmem:[%s285 + $0x8] sm:$0xf]
        %v340 = vld [vmem:[%s285 + $0xc] sm:$0xf]
        %v341 = vld [vmem:[%s285 + $0x10] sm:$0xf]
        %v342 = vld [vmem:[%s285 + $0x14] sm:$0xf]
        %v343 = vld [vmem:[%s285 + $0x18] sm:$0xf]
        %v344 = vld [vmem:[%s285 + $0x1c] sm:$0xf]
        %v345 = vld [vmem:[#allocation6] sm:$0xf]
        %v346 = vld [vmem:[#allocation6 + $0x4] sm:$0xf]
        %v347 = vld [vmem:[#allocation6 + $0x8] sm:$0xf]
        %v348 = vld [vmem:[#allocation6 + $0xc] sm:$0xf]
        %v349 = vld [vmem:[#allocation8] sm:$0x1]
        %v351 = vlaneseq
        %v352 = vshrl.u32 %v351, 7
        %v353 = vsub.s32 0, %v352
        %v354 = vrot.slane %v349, %v353
        %v364 = vunpack.c.l.b16 %v337
        %v365 = vunpack.c.l.b16 %v338
        %v366 = vunpack.c.l.b16 %v339
        %v367 = vunpack.c.l.b16 %v340
        %v368 = vunpack.c.l.b16 %v341
        %v369 = vunpack.c.l.b16 %v342
        %v370 = vunpack.c.l.b16 %v343
        %v371 = vunpack.c.l.b16 %v344
        %v372 = vpack.c.b16 %v365, %v364
        %v373 = vpack.c.b16 %v367, %v366
        %v374 = vpack.c.b16 %v369, %v368
        %v375 = vpack.c.b16 %v371, %v370
        %v380 = vunpack.c.l.b16 %v345
        %v381 = vunpack.c.l.b16 %v346
        %v382 = vunpack.c.l.b16 %v347
        %v383 = vunpack.c.l.b16 %v348
        %v384 = vpack.c.b16 %v381, %v380
        %v385 = vpack.c.b16 %v383, %v382
        %vm388 = vcmask 261120
        %v390 = vsel %vm388, %v372, 0
        %v393 = vsel %vm388, %v373, 0
        %v396 = vsel %vm388, %v374, 0
        %v399 = vsel %vm388, %v375, 0
        %401 = vmatprep.subr.bf16.mxu0 0
        %402 = vmatpush1.bf16.msra.mxu0 %v384
        %403 = vmatprep.subr.bf16.mxu0 0
        %404 = vmatpush1.bf16.msra.mxu0 %v385
        %405 = vmatprep.subr.bf16.mxu0 0
        %406 = vmatpush1.bf16.msra.mxu0 0
        %407 = vmatprep.subr.bf16.mxu0 0
        %408 = vmatpush1.bf16.msra.mxu0 0
        %409 = vmatprep.subr.bf16.mxu0 0
        %410 = vmatpush1.bf16.msra.mxu0 0
        %411 = vmatprep.subr.bf16.mxu0 0
        %412 = vmatpush1.bf16.msra.mxu0 0
        %413 = vmatprep.subr.bf16.mxu0 0
        %414 = vmatpush1.bf16.msra.mxu0 0
        %415 = vmatprep.subr.bf16.mxu0 0
        %416 = vmatpush1.bf16.msra.mxu0 0
        %417 = vmatprep.subr.bf16.mxu0 0
        %418 = vmatpush1.bf16.msra.mxu0 0
        %419 = vmatprep.subr.bf16.mxu0 0
        %420 = vmatpush1.bf16.msra.mxu0 0
        %421 = vmatprep.subr.bf16.mxu0 0
        %422 = vmatpush1.bf16.msra.mxu0 0
        %423 = vmatprep.subr.bf16.mxu0 0
        %424 = vmatpush1.bf16.msra.mxu0 0
        %425 = vmatprep.subr.bf16.mxu0 0
        %426 = vmatpush1.bf16.msra.mxu0 0
        %427 = vmatprep.subr.bf16.mxu0 0
        %428 = vmatpush1.bf16.msra.mxu0 0
        %429 = vmatprep.subr.bf16.mxu0 0
        %430 = vmatpush1.bf16.msra.mxu0 0
        %431 = vmatprep.subr.bf16.mxu0 0
        %432 = vmatpush1.bf16.msra.mxu0 0
        %433 = vmatprep.mubr.bf16.mxu0 0
        %434 = vmatmul.mubr.bf16.gmra.mrb[0].mxu0 %v390
        %v435 = vpop.f32.mrb[0].mxu0
        %v436 = vadd.f32 %v354, %v435
        %v437 = vpop.f32.mrb[0].mxu0
        %v438 = vpop.f32.mrb[0].mxu0
        %v439 = vadd.f32 %v354, %v438
        %v440 = vpop.f32.mrb[0].mxu0
        %441 = vmatprep.mubr.bf16.mxu0 0
        %442 = vmatmul.mubr.bf16.gmra.mrb[0].mxu0 %v393
        %v443 = vpop.f32.mrb[0].mxu0
        %v444 = vadd.f32 %v354, %v443
        %v445 = vpop.f32.mrb[0].mxu0
        %v446 = vpop.f32.mrb[0].mxu0
        %v447 = vadd.f32 %v354, %v446
        %v448 = vpop.f32.mrb[0].mxu0
        %449 = vmatprep.mubr.bf16.mxu0 0
        %450 = vmatmul.mubr.bf16.gmra.mrb[0].mxu0 %v396
        %v451 = vpop.f32.mrb[0].mxu0
        %v452 = vadd.f32 %v354, %v451
        %v453 = vpop.f32.mrb[0].mxu0
        %v454 = vpop.f32.mrb[0].mxu0
        %v455 = vadd.f32 %v354, %v454
        %v456 = vpop.f32.mrb[0].mxu0
        %457 = vmatprep.mubr.bf16.mxu0 0
        %458 = vmatmul.mubr.bf16.gmra.mrb[0].mxu0 %v399
        %v459 = vpop.f32.mrb[0].mxu0
        %v460 = vadd.f32 %v354, %v459
        %v461 = vpop.f32.mrb[0].mxu0
        %v462 = vpop.f32.mrb[0].mxu0
        %v463 = vadd.f32 %v354, %v462
        %v464 = vpop.f32.mrb[0].mxu0
        %465 = vdwg.mxu0
        %v466 = vmax.f32 %v436, 0.0
        %v467 = vmax.f32 %v439, 0.0
        %v468 = vmax.f32 %v444, 0.0
        %v469 = vmax.f32 %v447, 0.0
        %v470 = vmax.f32 %v452, 0.0
        %v471 = vmax.f32 %v455, 0.0
        %v472 = vmax.f32 %v460, 0.0
        %v473 = vmax.f32 %v463, 0.0
        %v474 = vld [vmem:[#allocation2] sm:$0x1]
        %v475 = vadd.f32 %v466, %v467
        %v476 = vadd.f32 %v475, %v468
        %v477 = vadd.f32 %v476, %v469
        %v478 = vadd.f32 %v477, %v470
        %v479 = vadd.f32 %v478, %v471
        %v480 = vadd.f32 %v479, %v472
        %v481 = vadd.f32 %v480, %v473
        %v482 = vrot.slane %v481, 4
        %v483 = vadd.f32 %v481, %v482
        %v484 = vrot.slane %v483, 2
        %v485 = vadd.f32 %v483, %v484
        %v486 = vrot.slane %v485, 1
        %v487 = vadd.f32 %v485, %v486
        %v488 = vadd.f32 %v474, %v487
        %489 = vst [vmem:[#allocation2] sm:$0x1] %v488
        %p490 = scmp.eq.s32.totalorder %s31, 3
        // Predicated region
        $region65: #{tpu_custom_call.1} parent=39 // pred_check
          %p491 = pneg %p490
        $region66: #{tpu_custom_call.1} parent=39 // pred_check_branch
          %493 = sbr.rel (%p491) target = $region68
        $region67: #{tpu_custom_call.1} parent=39 // pred_region
          %v494 = vld [vmem:[#allocation2] sm:$0x1]
          %v495 = vld [vmem:[#allocation9] sm:$0xff]
          %v496 = vld [vmem:[#allocation9 + $0x8] sm:$0xff]
          %v497 = vld [vmem:[#allocation9 + $0x10] sm:$0xff]
          %v498 = vld [vmem:[#allocation9 + $0x18] sm:$0xff]
          %v499 = vld [vmem:[#allocation9 + $0x20] sm:$0xff]
          %v500 = vld [vmem:[#allocation9 + $0x28] sm:$0xff]
          %v501 = vld [vmem:[#allocation9 + $0x30] sm:$0xff]
          %v502 = vld [vmem:[#allocation9 + $0x38] sm:$0xff]
          %v503 = vld [vmem:[#allocation9 + $0x40] sm:$0xff]
          %v504 = vld [vmem:[#allocation9 + $0x48] sm:$0xff]
          %v505 = vld [vmem:[#allocation9 + $0x50] sm:$0xff]
          %v506 = vld [vmem:[#allocation9 + $0x58] sm:$0xff]
          %v507 = vld [vmem:[#allocation9 + $0x60] sm:$0xff]
          %v508 = vld [vmem:[#allocation9 + $0x68] sm:$0xff]
          %v509 = vld [vmem:[#allocation9 + $0x70] sm:$0xff]
          %v510 = vld [vmem:[#allocation9 + $0x78] sm:$0xff]
          %v511 = vld [vmem:[#allocation11] sm:$0x1]
          %512 = vmatprep.subr.mxu0 0.0
          %513 = vmatpush1.msra.mxu0 %v495
          %514 = vmatprep.subr.mxu0 0.0
          %515 = vmatpush1.msra.mxu0 %v496
          %516 = vmatprep.subr.mxu0 0.0
          %517 = vmatpush1.msra.mxu0 %v497
          %518 = vmatprep.subr.mxu0 0.0
          %519 = vmatpush1.msra.mxu0 %v498
          %520 = vmatprep.subr.mxu0 0.0
          %521 = vmatpush1.msra.mxu0 %v499
          %522 = vmatprep.subr.mxu0 0.0
          %523 = vmatpush1.msra.mxu0 %v500
          %524 = vmatprep.subr.mxu0 0.0
          %525 = vmatpush1.msra.mxu0 %v501
          %526 = vmatprep.subr.mxu0 0.0
          %527 = vmatpush1.msra.mxu0 %v502
          %528 = vmatprep.subr.mxu0 0.0
          %529 = vmatpush1.msra.mxu0 %v503
          %530 = vmatprep.subr.mxu0 0.0
          %531 = vmatpush1.msra.mxu0 %v504
          %532 = vmatprep.subr.mxu0 0.0
          %533 = vmatpush1.msra.mxu0 %v505
          %534 = vmatprep.subr.mxu0 0.0
          %535 = vmatpush1.msra.mxu0 %v506
          %536 = vmatprep.subr.mxu0 0.0
          %537 = vmatpush1.msra.mxu0 %v507
          %538 = vmatprep.subr.mxu0 0.0
          %539 = vmatpush1.msra.mxu0 %v508
          %540 = vmatprep.subr.mxu0 0.0
          %541 = vmatpush1.msra.mxu0 %v509
          %542 = vmatprep.subr.mxu0 0.0
          %543 = vmatpush1.msra.mxu0 %v510
          %544 = vmatprep.subr.mxu0 0.0
          %545 = vmatpush1.msra.mxu0 0.0
          %546 = vmatprep.subr.mxu0 0.0
          %547 = vmatpush1.msra.mxu0 0.0
          %548 = vmatprep.subr.mxu0 0.0
          %549 = vmatpush1.msra.mxu0 0.0
          %550 = vmatprep.subr.mxu0 0.0
          %551 = vmatpush1.msra.mxu0 0.0
          %552 = vmatprep.subr.mxu0 0.0
          %553 = vmatpush1.msra.mxu0 0.0
          %554 = vmatprep.subr.mxu0 0.0
          %555 = vmatpush1.msra.mxu0 0.0
          %556 = vmatprep.subr.mxu0 0.0
          %557 = vmatpush1.msra.mxu0 0.0
          %558 = vmatprep.subr.mxu0 0.0
          %559 = vmatpush1.msra.mxu0 0.0
          %560 = vmatprep.subr.mxu0 0.0
          %561 = vmatpush1.msra.mxu0 0.0
          %562 = vmatprep.subr.mxu0 0.0
          %563 = vmatpush1.msra.mxu0 0.0
          %564 = vmatprep.subr.mxu0 0.0
          %565 = vmatpush1.msra.mxu0 0.0
          %566 = vmatprep.subr.mxu0 0.0
          %567 = vmatpush1.msra.mxu0 0.0
          %568 = vmatprep.subr.mxu0 0.0
          %569 = vmatpush1.msra.mxu0 0.0
          %570 = vmatprep.subr.mxu0 0.0
          %571 = vmatpush1.msra.mxu0 0.0
          %572 = vmatprep.subr.mxu0 0.0
          %573 = vmatpush1.msra.mxu0 0.0
          %574 = vmatprep.subr.mxu0 0.0
          %575 = vmatpush1.msra.mxu0 0.0
          %576 = vmatprep.mubr.f32.mxu0 0.0
          %577 = vmatmul.mubr.f32.gmra.mrb[0].mxu0 %v494
          %v578 = vpop.f32.mrb[0].mxu0
          %v579 = vadd.f32 %v511, %v578
          %v580 = vpop.f32.mrb[0].mxu0
          %581 = vdwg.mxu0
          %v582 = vlaneseq
          %v583 = vshrl.u32 %v582, 7
          %v584 = vsub.s32 0, %v583
          %v585 = vrot.slane %v579, %v584
          %586 = vst [vmem:[%s327] sm:$0xff] %v585
        $region68: #{tpu_custom_call.1} parent=39 // pred_fallthru
          _
        %s587 = sand.u32 %s169, 1
        %s588 = scalar_lea.sflag [#allocation5], %s587
        %s589 = sand.u32 %s169, 1
        %s590 = smul.addr %s589, 8
        %s591 = scalar_lea.vmem [#allocation12], %s590
        // Predicated region
        $region69: #{tpu_custom_call.1} parent=39 // pred_check
          %p592 = pneg %p179
        $region70: #{tpu_custom_call.1} parent=39 // pred_check_branch
          %594 = sbr.rel (%p592) target = $region72
        $region71: #{tpu_custom_call.1} parent=39 // pred_region
          %s596 = ssub.s32 128, 128
          %597 = vsyncadd %s588, %s596
          %s598 = sadd.s32 %s30, %s29
          %s599 = smul.addr %s598, 128
          %s600 = scalar_lea.hbm %s5, %s599
          %s602 = sshll.u32 %s591, 4
          %s603 = int_to_ptr.vmem [resolvable:$true] %s602
          %605 = dma.vmem_to_hbm [thread:$0]  %s603, 128, %s600, %s588
        $region72: #{tpu_custom_call.1} parent=39 // pred_fallthru
          _
      $region40: #{tpu_custom_call.1} parent=5 // pred_fallthru
        _
      %p606 = scmp.le.s32.totalorder 2, %s19
      // Predicated region
      $region73: #{tpu_custom_call.1} parent=5 // pred_check
        %p607 = pneg %p606
      $region74: #{tpu_custom_call.1} parent=5 // pred_check_branch
        %609 = sbr.rel (%p607) target = $region76
      $region75: #{tpu_custom_call.1} parent=5 // pred_region
        %s610 = ssub.s32 %s19, 2
        // Predicated region
        $region77: #{tpu_custom_call.1} parent=75 // pred_check
          %p611 = pneg %p185
        $region78: #{tpu_custom_call.1} parent=75 // pred_check_branch
          %613 = sbr.rel (%p611) target = $region80
        $region79: #{tpu_custom_call.1} parent=75 // pred_region
          %s614 = sand.u32 %s170, 1
          %s615 = scalar_lea.sflag [#allocation5], %s614
          %s616 = sand.u32 %s170, 1
          %s617 = smul.addr %s616, 8
          %s618 = scalar_lea.vmem [#allocation12], %s617
          %619 = dma.done %s615, 128
        $region80: #{tpu_custom_call.1} parent=75 // pred_fallthru
          _
      $region76: #{tpu_custom_call.1} parent=5 // pred_fallthru
        _
    $region6: #{tpu_custom_call.1} parent=1 // loop_footer
      %s23 = sadd.s32 1, %s19
    $region7: #{tpu_custom_call.1} parent=1 // loop_footer_branch
      %18 = sbr.rel target = $region3
    $region8: #{tpu_custom_call.1} parent=1 // loop_exit
      _
    %620 = vsyncpa [#allocation4], 1
    %s621 = scalar_lea.sflag [#allocation4], 1
    %622 = vsyncpa %s621, 1
    %623 = vsyncpa [#allocation7], 1
    %624 = vsyncpa [#allocation10], 1
    %625 = vsyncpa [#allocation5], 1
    %s626 = scalar_lea.sflag [#allocation5], 1
    %627 = vsyncpa %s626, 1

</llo_original>
